<compile_context>
chip_gen: v6e
topology: v6e:2x2x1
jax: 0.10.0
libtpu: 0.0.40
codegen_flags: <defaults>
</compile_context>

<pallas_src>
import math

import jax
import jax.numpy as jnp
from jax.experimental import pallas as pl
from jax.experimental.pallas import tpu as pltpu


def _round_up(a, b):
    return ((a + b - 1) // b) * b


def _eills_kernel(x_ref, w_ref, b_ref, o_ref):
    # x_ref: (TM, Dp)  streamed batch tile in its native dtype, Dp = R * D
    # w_ref: (Dp, R)   tiny resident packed weight (standardization folded)
    # b_ref: (1, 1)    SMEM scalar: folded bias (f32)
    # o_ref: (TM, R)   output tile (R samples per packed row), f32
    x = x_ref[...]
    if not (x.dtype == jnp.float32 or x.dtype == jnp.bfloat16):
        # Non-MXU-native dtype (e.g. int8 has no MXU path on v7x): upcast.
        x = x.astype(jnp.float32)
    y = jnp.dot(x, w_ref[...], preferred_element_type=jnp.float32)
    o_ref[...] = y + b_ref[0, 0]


def eills_linear_forward(x, x_mean, x_std, weight, bias, *,
                         tm=None, max_packed_width=2048):
    """Pallas forward: ((x - mean) / std) @ weight.T + bias -> (N, 1) f32."""
    N, D = x.shape
    assert N > 0 and D > 0
    assert x_mean.shape == (1, D) and x_std.shape == (1, D)
    assert weight.shape == (1, D) and bias.shape == (1,)
    f32 = jnp.float32

    # ---- Fold standardization into the affine map (tiny (1, D) wrapper work).
    #   ((x - m) / s) @ w.T + b  ==  x @ (w / s).T + (b - sum(m * (w / s)))
    w_eff = weight.astype(f32) / x_std.astype(f32)                            # (1, D)
    b_eff = bias.astype(f32) - jnp.sum(x_mean.astype(f32) * w_eff, axis=-1)   # (1,)
    b_smem = b_eff.reshape(1, 1)

    # ---- Lane-dense packing: R samples per packed row, Dp = R*D.
    # Prefer Dp = lcm(D, 128) (fully lane-dense); cap the packed width, and
    # force R | N so the x reshape is a pure bitcast (never pad/copy x).
    r_full = math.lcm(D, 128) // D
    if r_full * D > max_packed_width:
        r_full = max(1, 128 // D)           # floor packing for awkward D
    R = max(1, math.gcd(N, r_full))
    Dp = R * D
    rows = N // R                            # exact: R divides N
    x_packed = x.reshape(rows, Dp)           # free bitcast (contiguous merge)

    # ---- Weight: block-"diagonal" (Dp, R); column r carries w_eff for slot r.
    native = (x.dtype == jnp.float32) or (x.dtype == jnp.bfloat16)
    w_packed = (jnp.eye(R, dtype=f32)[:, None, :] *
                w_eff.reshape(1, D, 1)).reshape(Dp, R)
    w_packed = w_packed.astype(x.dtype if native else f32)

    # ---- VMEM-budgeted batch tile size.
    try:
        vmem_cap = int(pltpu.get_tpu_info().vmem_capacity_bytes)
    except Exception:
        vmem_cap = 64 * 1024 * 1024          # conservative (fits v7x too)
    vmem_limit = (vmem_cap * 3) // 4         # 96 MiB on v5e/v6e, 48 MiB on v7x
    headroom = 4 * 1024 * 1024               # compiler-internal scratch

    x_itemsize = jnp.dtype(x.dtype).itemsize
    row_mult = {4: 8, 2: 16, 1: 32}.get(x_itemsize, 8)   # sublane packing
    cast_bytes = 0 if native else Dp * 4                 # in-kernel f32 temp
    fixed = 2 * Dp * R * w_packed.dtype.itemsize + 4096  # weight dbl-buffer
    per_row = 2 * (Dp * x_itemsize + R * 4) + cast_bytes
    avail = max(vmem_limit - headroom - fixed, per_row * row_mult)
    tm_budget = max(row_mult, (avail // per_row) // row_mult * row_mult)

    small_vmem = vmem_cap <= 64 * 1024 * 1024   # v7x-like: 2 TCs, 64 MiB VMEM
    if tm is None:
        tm = tm_budget
        if small_vmem:
            # Keep grid >= 4 so the megacore "parallel" split stays balanced
            # and double-buffered on both TensorCores.
            tm = min(tm, max(row_mult, _round_up(-(-rows // 4), row_mult)))
        if tm >= rows:
            tm = rows                         # single full block (always legal)
        elif small_vmem and row_mult < tm < rows:
            g = -(-rows // tm)
            if g > 1 and g % 2 == 1:          # nudge grid to an even count
                tm2 = _round_up(-(-rows // (g + 1)), row_mult)
                if row_mult <= tm2 < rows and (-(-rows // tm2)) % 2 == 0:
                    tm = tm2
    tm = int(tm)
    grid = (pl.cdiv(rows, tm),)               # ragged tail = partial block

    cost = pl.CostEstimate(
        flops=2 * rows * Dp * R,
        transcendentals=0,
        bytes_accessed=(rows * Dp * x_itemsize + rows * R * 4
                        + Dp * R * w_packed.dtype.itemsize + 4),
    )

    out = pl.pallas_call(
        _eills_kernel,
        out_shape=jax.ShapeDtypeStruct((rows, R), f32),
        grid_spec=pltpu.PrefetchScalarGridSpec(
            num_scalar_prefetch=0,
            grid=grid,
            in_specs=[
                # x: the only large stream, tiled over the batch rows.
                pl.BlockSpec((tm, Dp), lambda i: (i, 0)),
                # packed weight: tiny, same block every step.
                pl.BlockSpec((Dp, R), lambda i: (0, 0)),
                # folded bias scalar lives in SMEM.
                pl.BlockSpec(memory_space=pltpu.MemorySpace.SMEM),
            ],
            out_specs=pl.BlockSpec((tm, R), lambda i: (i, 0)),
        ),
        compiler_params=pltpu.CompilerParams(
            dimension_semantics=("parallel",),   # batch axis shards across TCs
            vmem_limit_bytes=int(vmem_limit),
        ),
        cost_estimate=cost,
    )(x_packed, w_packed, b_smem)

    # (rows, R) row-major is exactly sample order and rows*R == N.
    return out.reshape(N, 1)


def reference_forward(x, x_mean, x_std, weight, bias):
    # VPU-exact f32 reference (avoids TPU default reduced-precision matmul).
    z = (x.astype(jnp.float32) - x_mean) / x_std
    return jnp.sum(z * weight, axis=-1, keepdims=True) + bias[None, :]


if __name__ == "__main__":
    key = jax.random.PRNGKey(0)
    ks = jax.random.split(key, 15)

    def make_case(kx, kw, kb, km, ksd, N, D, dtype=jnp.float32):
        x = jax.random.normal(kx, (N, D), dtype=jnp.float32).astype(dtype)
        bound = 1.0 / (D ** 0.5)
        w = jax.random.uniform(kw, (1, D), minval=-bound, maxval=bound, dtype=jnp.float32)
        b = jax.random.uniform(kb, (1,), minval=-bound, maxval=bound, dtype=jnp.float32)
        m = 0.1 * jax.random.normal(km, (1, D), dtype=jnp.float32)
        s = 1.0 + 0.5 * jax.random.uniform(ksd, (1, D), dtype=jnp.float32)
        return x, m, s, w, b

    # Tolerances are sized for the TPU MXU (bf16-pass) matmul path; a wrong
    # kernel would be off by O(1), so these still catch semantic errors.

    # Case 1: D = 32 -> Dp = 128, R = 4 (fully lane-dense packing).
    a1 = make_case(*ks[0:5], N=256, D=32)
    y1 = jax.block_until_ready(eills_linear_forward(*a1))
    r1 = reference_forward(*a1)
    assert y1.shape == (256, 1)
    assert jnp.allclose(y1, r1, atol=1e-2, rtol=1e-2), "case 1 mismatch vs reference"

    # Case 2: D = 48 (128 % D != 0), N = 200 -> Dp = 384, R = 8; no pad/copy of x.
    a2 = make_case(*ks[5:10], N=200, D=48)
    y2 = jax.block_until_ready(eills_linear_forward(*a2))
    r2 = reference_forward(*a2)
    assert y2.shape == (200, 1)
    assert jnp.allclose(y2, r2, atol=1e-2, rtol=1e-2), "case 2 mismatch vs reference"

    # Case 3: bf16 x streams natively into the MXU (no in-kernel f32 upcast).
    a3 = make_case(*ks[10:15], N=192, D=32, dtype=jnp.bfloat16)
    y3 = jax.block_until_ready(eills_linear_forward(*a3))
    r3 = reference_forward(*a3)
    assert y3.shape == (192, 1)
    assert jnp.allclose(y3, r3, atol=5e-2, rtol=5e-2), "case 3 mismatch vs reference"

    print("KERNEL_OK")
</pallas_src>

<mosaic_0001>
module attributes {stable_mosaic.version = 11 : i64} {
  func.func @_eills_kernel(%arg0: i32, %arg1: memref<16x128xf32, #tpu.memory_space<vmem>>, %arg2: memref<128x4xf32, #tpu.memory_space<vmem>>, %arg3: memref<1x1xf32, #tpu.memory_space<smem>>, %arg4: memref<16x4xf32, #tpu.memory_space<vmem>>) attributes {dimension_semantics = [#tpu.dimension_semantics<parallel>], iteration_bounds = array<i64: 4>, scalar_prefetch = 0 : i64, scratch_operands = 0 : i64, tpu.core_type = #tpu.core_type<tc>, window_params = [{transform_indices = @transform_0, window_bounds = array<i64: 16, 128>}, {pipeline_mode = #tpu.pipeline_mode<synchronous>, transform_indices = @transform_1, window_bounds = array<i64: 128, 4>}, {transform_indices = @transform_2, window_bounds = array<i64: 1, 1>}, {transform_indices = @transform_3, window_bounds = array<i64: 16, 4>}]} {
    %c0 = arith.constant 0 : index
    %c0_0 = arith.constant 0 : index
    %0 = vector.load %arg1[%c0, %c0_0] : memref<16x128xf32, #tpu.memory_space<vmem>>, vector<16x128xf32>
    %c0_1 = arith.constant 0 : index
    %c0_2 = arith.constant 0 : index
    %1 = vector.load %arg2[%c0_1, %c0_2] : memref<128x4xf32, #tpu.memory_space<vmem>>, vector<128x4xf32>
    %cst = arith.constant dense<0.000000e+00> : vector<16x4xf32>
    %2 = tpu.matmul %0, %1, %cst {dimension_numbers = #tpu.dot_dimension_numbers<[1], [0], [0], [1], [0, 0, 1, 1], [], []>} : vector<16x128xf32>, vector<128x4xf32>, vector<16x4xf32> -> vector<16x4xf32>
    %c0_3 = arith.constant 0 : index
    %c0_4 = arith.constant 0 : index
    %3 = memref.load %arg3[%c0_3, %c0_4] : memref<1x1xf32, #tpu.memory_space<smem>>
    %4 = vector.broadcast %3 : f32 to vector<16x4xf32>
    %5 = arith.addf %2, %4 : vector<16x4xf32>
    %c0_5 = arith.constant 0 : index
    %c0_6 = arith.constant 0 : index
    %6 = vector.load %arg4[%c0_5, %c0_6] : memref<16x4xf32, #tpu.memory_space<vmem>>, vector<16x4xf32>
    tpu.vector_store %arg4[%c0_5, %c0_6], %5 {strides = array<i32>} : memref<16x4xf32, #tpu.memory_space<vmem>>, vector<16x4xf32>,
    return
  }
  func.func @transform_0(%arg0: i32) -> (i32, i32) {
    %c0_i32 = arith.constant 0 : i32
    %c0_i32_0 = arith.constant 0 : i32
    return %arg0, %c0_i32 : i32, i32
  }
  func.func @transform_1(%arg0: i32) -> (i32, i32) {
    %c0_i32 = arith.constant 0 : i32
    %c0_i32_0 = arith.constant 0 : i32
    %c0_i32_1 = arith.constant 0 : i32
    return %c0_i32, %c0_i32_0 : i32, i32
  }
  func.func @transform_2(%arg0: i32) -> (i32, i32) {
    %c0_i32 = arith.constant 0 : i32
    %c0_i32_0 = arith.constant 0 : i32
    %c0_i32_1 = arith.constant 0 : i32
    return %c0_i32, %c0_i32_0 : i32, i32
  }
  func.func @transform_3(%arg0: i32) -> (i32, i32) {
    %c0_i32 = arith.constant 0 : i32
    %c0_i32_0 = arith.constant 0 : i32
    return %arg0, %c0_i32 : i32, i32
  }
}

</mosaic_0001>

<llo_original>
// kernel: tpu_custom_call.1
$region0: #{tpu_custom_call.1}
  #allocation0 [shape = 'u32[]', space=smem, size = 0x4, offset = 0x4, fixed_abs, tag = 'smem constant byte address 0x4 - core index']
  #allocation1 [shape = 'u32[144,128]{1,0:T(1,128)}', space=vmem, size = 0x12000, scoped, tag = 'internal scratch']
  #allocation2 [shape = 'f32[1,1]{1,0:T(1,128)S(6)}', space=smem, size = 0x200, scoped, tag = 'scoped memory for tpu_custom_call.1']
  %s0 = inlined_call_operand.vmem [shape: f32[64,128], index: 0, kind: input, shape index: {}]
  %s1 = inlined_call_operand.vmem [shape: f32[128,4], index: 1, kind: input, shape index: {}]
  %s2 = inlined_call_operand.<no memory space> [shape: f32[1,1], index: 2, kind: input, shape index: {}]
  %s3 = inlined_call_operand.vmem [shape: f32[64,4], index: 3, kind: output, shape index: {}]
  %s4 = sld [smem:[#allocation0]]
  $region45: #{tpu_custom_call.1} parent=0
    _
  %s6 = ssub.s32 1, %s4
  %s7 = scalar_select 0, %s6, %s4
  %8 = sst [smem:[#allocation2]] %s2
  loop: start=0, step=1, limit=6
  $region2: #{tpu_custom_call.1} parent=0 // loop_pre_header
    _
  $region3: #{tpu_custom_call.1} parent=0 // loop_header
    %s10 = sphi 0, %s14
    %p11 = scmp.ge.s32.totalorder %s10, 6
    %s20 = sphi 0, %s22
    %s23 = sphi 0, %s20
    %s24 = sphi 0, %s23
    %s40 = sphi 0, %s24
    %s44 = sphi 0, %s44
    %s46 = sphi 0, %s44
    %s47 = sphi 0, %s46
    %s61 = sphi 0, %s47
    %s65 = sphi 0, %s65
    %s67 = sphi 0, %s65
    %s68 = sphi 0, %s67
    %s82 = sphi 0, %s68
    %s88 = sphi 0, %s90
    %s91 = sphi 0, %s88
    %s92 = sphi 0, %s91
    %s108 = sphi 0, %s92
  $region4: #{tpu_custom_call.1} parent=0 // loop_header_branch
    %13 = sbr.rel (%p11) target = $region8
  $region5: #{tpu_custom_call.1} parent=0 // loop_body
    %s15 = ssub.s32 %s10, 1
    %s16 = ssub.s32 %s10, 2
    %s17 = sadd.s32 %s10, 1
    %s18 = ssub.s32 %s10, %s17
    %p19 = scmp.eq.s32.totalorder %s18, 0
    %s21 = sadd.s32 %s20, 1
    %s22 = scalar_select %p19, %s20, %s21
    %p25 = pneg %p19
    %p26 = scmp.eq.s32.totalorder %s10, 3
    %p27 = por %p25, %p26
    %p28 = scmp.ne.s32.totalorder %s20, %s23
    %p29 = scmp.eq.s32.totalorder %s10, 0
    %p30 = por %p28, %p29
    %p31 = scmp.ne.s32.totalorder %s20, %s23
    %p32 = scmp.eq.s32.totalorder %s15, 3
    %p33 = por %p31, %p32
    %p34 = scmp.ne.s32.totalorder %s23, %s24
    %p35 = scmp.eq.s32.totalorder %s15, 0
    %p36 = por %p34, %p35
    %p37 = scmp.ne.s32.totalorder %s23, %s24
    %p38 = scmp.eq.s32.totalorder %s16, 3
    %p39 = por %p37, %p38
    %p41 = scmp.ne.s32.totalorder %s24, %s40
    %p42 = scmp.eq.s32.totalorder %s16, 0
    %p43 = por %p41, %p42
    %s45 = sadd.s32 %s44, 1
    %p48 = scmp.eq.s32.totalorder %s10, 3
    %p49 = scmp.ne.s32.totalorder %s44, %s46
    %p50 = scmp.eq.s32.totalorder %s10, 0
    %p51 = por %p49, %p50
    %p52 = scmp.ne.s32.totalorder %s44, %s46
    %p53 = scmp.eq.s32.totalorder %s15, 3
    %p54 = por %p52, %p53
    %p55 = scmp.ne.s32.totalorder %s46, %s47
    %p56 = scmp.eq.s32.totalorder %s15, 0
    %p57 = por %p55, %p56
    %p58 = scmp.ne.s32.totalorder %s46, %s47
    %p59 = scmp.eq.s32.totalorder %s16, 3
    %p60 = por %p58, %p59
    %p62 = scmp.ne.s32.totalorder %s47, %s61
    %p63 = scmp.eq.s32.totalorder %s16, 0
    %p64 = por %p62, %p63
    %s66 = sadd.s32 %s65, 1
    %p69 = scmp.eq.s32.totalorder %s10, 3
    %p70 = scmp.ne.s32.totalorder %s65, %s67
    %p71 = scmp.eq.s32.totalorder %s10, 0
    %p72 = por %p70, %p71
    %p73 = scmp.ne.s32.totalorder %s65, %s67
    %p74 = scmp.eq.s32.totalorder %s15, 3
    %p75 = por %p73, %p74
    %p76 = scmp.ne.s32.totalorder %s67, %s68
    %p77 = scmp.eq.s32.totalorder %s15, 0
    %p78 = por %p76, %p77
    %p79 = scmp.ne.s32.totalorder %s67, %s68
    %p80 = scmp.eq.s32.totalorder %s16, 3
    %p81 = por %p79, %p80
    %p83 = scmp.ne.s32.totalorder %s68, %s82
    %p84 = scmp.eq.s32.totalorder %s16, 0
    %p85 = por %p83, %p84
    %s86 = ssub.s32 %s10, %s17
    %p87 = scmp.eq.s32.totalorder %s86, 0
    %s89 = sadd.s32 %s88, 1
    %s90 = scalar_select %p87, %s88, %s89
    %p93 = pneg %p87
    %p94 = scmp.eq.s32.totalorder %s10, 3
    %p95 = por %p93, %p94
    %p96 = scmp.ne.s32.totalorder %s88, %s91
    %p97 = scmp.eq.s32.totalorder %s10, 0
    %p98 = por %p96, %p97
    %p99 = scmp.ne.s32.totalorder %s88, %s91
    %p100 = scmp.eq.s32.totalorder %s15, 3
    %p101 = por %p99, %p100
    %p102 = scmp.ne.s32.totalorder %s91, %s92
    %p103 = scmp.eq.s32.totalorder %s15, 0
    %p104 = por %p102, %p103
    %p105 = scmp.ne.s32.totalorder %s91, %s92
    %p106 = scmp.eq.s32.totalorder %s16, 3
    %p107 = por %p105, %p106
    %p109 = scmp.ne.s32.totalorder %s92, %s108
    %p110 = scmp.eq.s32.totalorder %s16, 0
    %p111 = por %p109, %p110
    %p112 = scmp.le.s32.totalorder 1, %s10
    %p113 = scmp.lt.s32.totalorder %s10, 5
    %p114 = pnand %p112, %p113
    %p115 = pneg %p114
    // Predicated region
    $region9: #{tpu_custom_call.1} parent=5 // pred_check
      _
    $region10: #{tpu_custom_call.1} parent=5 // pred_check_branch
      %117 = sbr.rel (%p114) target = $region12
    $region11: #{tpu_custom_call.1} parent=5 // pred_region
      %s118 = ssub.s32 %s10, 1
      // Predicated region
      $region13: #{tpu_custom_call.1} parent=11 // pred_check
        %p119 = pneg %p57
      $region14: #{tpu_custom_call.1} parent=11 // pred_check_branch
        %121 = sbr.rel (%p119) target = $region16
      $region15: #{tpu_custom_call.1} parent=11 // pred_region
        _
      $region16: #{tpu_custom_call.1} parent=11 // pred_fallthru
        _
      // Predicated region
      $region17: #{tpu_custom_call.1} parent=11 // pred_check
        %p122 = pneg %p78
      $region18: #{tpu_custom_call.1} parent=11 // pred_check_branch
        %124 = sbr.rel (%p122) target = $region20
      $region19: #{tpu_custom_call.1} parent=11 // pred_region
        _
      $region20: #{tpu_custom_call.1} parent=11 // pred_fallthru
        _
    $region12: #{tpu_custom_call.1} parent=5 // pred_fallthru
      _
    %p125 = scmp.lt.s32.totalorder %s10, 4
    // Predicated region
    $region21: #{tpu_custom_call.1} parent=5 // pred_check
      %p126 = pneg %p125
    $region22: #{tpu_custom_call.1} parent=5 // pred_check_branch
      %128 = sbr.rel (%p126) target = $region24
    $region23: #{tpu_custom_call.1} parent=5 // pred_region
      // Predicated region
      $region25: #{tpu_custom_call.1} parent=23 // pred_check
        %p129 = pneg %p30
      $region26: #{tpu_custom_call.1} parent=23 // pred_check_branch
        %131 = sbr.rel (%p129) target = $region28
      $region27: #{tpu_custom_call.1} parent=23 // pred_region
        %s132 = smul.u32 2, %s10
        %p133 = scmp.lt.s32.totalorder %s132, 7
        %s134 = scalar_select %p133, %s132, 7
        %s135 = smul.addr %s134, 8
        %s136 = scalar_lea.vmem %s0, %s135
        %s137 = smul.u32 2, %s10
      $region28: #{tpu_custom_call.1} parent=23 // pred_fallthru
        _
    $region24: #{tpu_custom_call.1} parent=5 // pred_fallthru
      _
    %p138 = scmp.le.s32.totalorder 1, %s10
    %p139 = scmp.lt.s32.totalorder %s10, 5
    %p140 = pnand %p138, %p139
    %p141 = pneg %p140
    // Predicated region
    $region29: #{tpu_custom_call.1} parent=5 // pred_check
      _
    $region30: #{tpu_custom_call.1} parent=5 // pred_check_branch
      %143 = sbr.rel (%p140) target = $region32
    $region31: #{tpu_custom_call.1} parent=5 // pred_region
      %s144 = ssub.s32 %s10, 1
      %s145 = smul.u32 2, %s15
      %p146 = scmp.lt.s32.totalorder %s145, 7
      %s147 = scalar_select %p146, %s145, 7
      %s148 = smul.addr %s147, 8
      %s149 = scalar_lea.vmem %s0, %s148
      %p150 = pneg %p36
      %p151 = pneg %p33
      %p152 = pneg %p57
      %p153 = pneg %p54
      %p154 = pneg %p78
      %p155 = pneg %p75
      %p156 = pneg %p104
      %p157 = pneg %p101
      %s158 = smul.u32 2, %s15
      %p159 = scmp.lt.s32.totalorder %s158, 7
      %s160 = scalar_select %p159, %s158, 7
      %s161 = smul.addr %s160, 8
      %s162 = scalar_lea.vmem %s3, %s161
      %s163 = smul.u32 2, %s15
      %p164 = scmp.lt.s32.totalorder %s163, 7
      %s165 = scalar_select %p164, %s163, 7
      %s166 = smul.addr %s165, 8
      %s167 = scalar_lea.vmem %s0, %s166
      %s168 = smul.u32 2, %s15
      %s169 = smul.u32 2, %s15
      %p170 = scmp.lt.s32.totalorder %s169, 7
      %s171 = scalar_select %p170, %s169, 7
      %s172 = smul.addr %s171, 8
      %s173 = scalar_lea.vmem %s3, %s172
      %s174 = smul.u32 2, %s15
      %v175 = vld [vmem:[%s167] sm:$0xff]
      %v176 = vld [vmem:[%s167 + $0x8] sm:$0xff]
      %v177 = vld [vmem:[%s1] sm:$0xff]
      %v178 = vld [vmem:[%s1 + $0x8] sm:$0xff]
      %v179 = vld [vmem:[%s1 + $0x10] sm:$0xff]
      %v180 = vld [vmem:[%s1 + $0x18] sm:$0xff]
      %v181 = vld [vmem:[%s1 + $0x20] sm:$0xff]
      %v182 = vld [vmem:[%s1 + $0x28] sm:$0xff]
      %v183 = vld [vmem:[%s1 + $0x30] sm:$0xff]
      %v184 = vld [vmem:[%s1 + $0x38] sm:$0xff]
      %v185 = vld [vmem:[%s1 + $0x40] sm:$0xff]
      %v186 = vld [vmem:[%s1 + $0x48] sm:$0xff]
      %v187 = vld [vmem:[%s1 + $0x50] sm:$0xff]
      %v188 = vld [vmem:[%s1 + $0x58] sm:$0xff]
      %v189 = vld [vmem:[%s1 + $0x60] sm:$0xff]
      %v190 = vld [vmem:[%s1 + $0x68] sm:$0xff]
      %v191 = vld [vmem:[%s1 + $0x70] sm:$0xff]
      %v192 = vld [vmem:[%s1 + $0x78] sm:$0xff]
      %s193 = sld [smem:[#allocation2]]
      %v194 = vstv %s193
      %195 = vmatprep.subr.mxu0 0.0
      %196 = vmatpush1.msra.mxu0 %v192
      %197 = vmatprep.subr.mxu0 0.0
      %198 = vmatpush1.msra.mxu0 %v191
      %199 = vmatprep.subr.mxu0 0.0
      %200 = vmatpush1.msra.mxu0 %v190
      %201 = vmatprep.subr.mxu0 0.0
      %202 = vmatpush1.msra.mxu0 %v189
      %203 = vmatprep.subr.mxu0 0.0
      %204 = vmatpush1.msra.mxu0 %v188
      %205 = vmatprep.subr.mxu0 0.0
      %206 = vmatpush1.msra.mxu0 %v187
      %207 = vmatprep.subr.mxu0 0.0
      %208 = vmatpush1.msra.mxu0 %v186
      %209 = vmatprep.subr.mxu0 0.0
      %210 = vmatpush1.msra.mxu0 %v185
      %211 = vmatprep.subr.mxu0 0.0
      %212 = vmatpush1.msra.mxu0 %v184
      %213 = vmatprep.subr.mxu0 0.0
      %214 = vmatpush1.msra.mxu0 %v183
      %215 = vmatprep.subr.mxu0 0.0
      %216 = vmatpush1.msra.mxu0 %v182
      %217 = vmatprep.subr.mxu0 0.0
      %218 = vmatpush1.msra.mxu0 %v181
      %219 = vmatprep.subr.mxu0 0.0
      %220 = vmatpush1.msra.mxu0 %v180
      %221 = vmatprep.subr.mxu0 0.0
      %222 = vmatpush1.msra.mxu0 %v179
      %223 = vmatprep.subr.mxu0 0.0
      %224 = vmatpush1.msra.mxu0 %v178
      %225 = vmatprep.subr.mxu0 0.0
      %226 = vmatpush1.msra.mxu0 %v177
      %227 = vmatprep.subr.mxu0 0.0
      %228 = vmatpush2.msra.mxu0 0.0
      %229 = vmatprep.subr.mxu0 0.0
      %230 = vmatpush2.msra.mxu0 0.0
      %231 = vmatprep.subr.mxu0 0.0
      %232 = vmatpush2.msra.mxu0 0.0
      %233 = vmatprep.subr.mxu0 0.0
      %234 = vmatpush2.msra.mxu0 0.0
      %235 = vmatprep.subr.mxu0 0.0
      %236 = vmatpush2.msra.mxu0 0.0
      %237 = vmatprep.subr.mxu0 0.0
      %238 = vmatpush2.msra.mxu0 0.0
      %239 = vmatprep.subr.mxu0 0.0
      %240 = vmatpush2.msra.mxu0 0.0
      %241 = vmatprep.subr.mxu0 0.0
      %242 = vmatpush2.msra.mxu0 0.0
      %243 = vmatprep.subr.mxu0 0.0
      %244 = vmatpush2.msra.mxu0 0.0
      %245 = vmatprep.subr.mxu0 0.0
      %246 = vmatpush2.msra.mxu0 0.0
      %247 = vmatprep.subr.mxu0 0.0
      %248 = vmatpush2.msra.mxu0 0.0
      %249 = vmatprep.subr.mxu0 0.0
      %250 = vmatpush2.msra.mxu0 0.0
      %251 = vmatprep.subr.mxu0 0.0
      %252 = vmatpush2.msra.mxu0 0.0
      %253 = vmatprep.subr.mxu0 0.0
      %254 = vmatpush2.msra.mxu0 0.0
      %255 = vmatprep.subr.mxu0 0.0
      %256 = vmatpush2.msra.mxu0 0.0
      %257 = vmatprep.subr.mxu0 0.0
      %258 = vmatpush2.msra.mxu0 0.0
      %259 = vmatprep.mubr.f32.mxu0 0.0
      %260 = vmatmul.mubr.f32.gmra.mxu0 %v175
      %v261 = vpop.f32.mrf.mxu0
      %v262 = vadd.f32 %v194, %v261
      %v263 = vpop.f32.mrf.mxu0
      %264 = vmatprep.mubr.f32.mxu0 0.0
      %265 = vmatmul.mubr.f32.gmra.mxu0 %v176
      %v266 = vpop.f32.mrf.mxu0
      %v267 = vadd.f32 %v194, %v266
      %v268 = vpop.f32.mrf.mxu0
      %269 = vdwg.mxu0
      %vm270 = vcmask 31744
      %271 = vst.msk [vmem:[%s173] sm:$0xff] %vm270, %v262
      %272 = vst.msk [vmem:[%s173 + $0x8] sm:$0xff] %vm270, %v267
      %s273 = smul.u32 2, %s15
      %p274 = scmp.lt.s32.totalorder %s273, 7
      %s275 = scalar_select %p274, %s273, 7
      %s276 = smul.addr %s275, 8
      %s277 = scalar_lea.vmem %s3, %s276
      // Predicated region
      $region33: #{tpu_custom_call.1} parent=31 // pred_check
        %p278 = pneg %p101
      $region34: #{tpu_custom_call.1} parent=31 // pred_check_branch
        %280 = sbr.rel (%p278) target = $region36
      $region35: #{tpu_custom_call.1} parent=31 // pred_region
        %s281 = smul.u32 2, %s15
      $region36: #{tpu_custom_call.1} parent=31 // pred_fallthru
        _
    $region32: #{tpu_custom_call.1} parent=5 // pred_fallthru
      _
    %p282 = scmp.le.s32.totalorder 2, %s10
    // Predicated region
    $region37: #{tpu_custom_call.1} parent=5 // pred_check
      %p283 = pneg %p282
    $region38: #{tpu_custom_call.1} parent=5 // pred_check_branch
      %285 = sbr.rel (%p283) target = $region40
    $region39: #{tpu_custom_call.1} parent=5 // pred_region
      %s286 = ssub.s32 %s10, 2
      // Predicated region
      $region41: #{tpu_custom_call.1} parent=39 // pred_check
        %p287 = pneg %p107
      $region42: #{tpu_custom_call.1} parent=39 // pred_check_branch
        %289 = sbr.rel (%p287) target = $region44
      $region43: #{tpu_custom_call.1} parent=39 // pred_region
        %s290 = smul.u32 2, %s16
        %p291 = scmp.lt.s32.totalorder %s290, 7
        %s292 = scalar_select %p291, %s290, 7
        %s293 = smul.addr %s292, 8
        %s294 = scalar_lea.vmem %s3, %s293
      $region44: #{tpu_custom_call.1} parent=39 // pred_fallthru
        _
    $region40: #{tpu_custom_call.1} parent=5 // pred_fallthru
      _
  $region6: #{tpu_custom_call.1} parent=0 // loop_footer
    %s14 = sadd.s32 1, %s10
  $region7: #{tpu_custom_call.1} parent=0 // loop_footer_branch
    %9 = sbr.rel target = $region3
  $region8: #{tpu_custom_call.1} parent=0 // loop_exit
    _

</llo_original>
